<compile_context>
chip_gen: v7x
topology: tpu7x:2x2x1
jax: 0.10.0
libtpu: 0.0.40
codegen_flags: <defaults>
</compile_context>

<pallas_src>
import functools

import jax
import jax.numpy as jnp
from jax.experimental import pallas as pl
from jax.experimental.pallas import tpu as pltpu


_ROW_ALIGN = 32          # covers sublane tiling for f32 (8), bf16 (16), int8 (32)
_LANE_ALIGN = 128        # lane width
_MIN_GRID_STEPS = 8      # keep the DMA pipeline / both v7x TensorCores busy


def _vmem_limit_bytes():
    """Scoped VMEM limit to request (the 16/32 MiB default gates tile size)."""
    try:
        phys = int(pltpu.get_tpu_info().vmem_capacity_bytes)
    except Exception:  # conservative fallback: assume v7x's 64 MiB physical VMEM
        phys = 64 * 1024 * 1024
    # Stay well under physical VMEM (v5e/v6e: 128 MiB -> 96 MiB, v7x: 64 -> 48).
    return int(min(96 * 1024 * 1024, (phys * 3) // 4))


def _target_tile_bytes(vmem_limit):
    # Double-buffered input + output tiles plus in-kernel f32 temporaries
    # => budget ~1/8 of the scoped limit per input-dtype tile (2-8 MiB-ish),
    # which lands in the ~85% of HBM-roofline regime instead of ~29% at 128 rows.
    return int(max(1 << 20, min(8 << 20, vmem_limit // 8)))


def _pick_row_tile(n_rows, row_bytes, target_bytes):
    """Largest row tile (multiple of _ROW_ALIGN) that fits the byte budget."""
    tm = target_bytes // max(row_bytes, 1)
    if tm >= n_rows:
        return n_rows                     # one block covering the full extent
    # Keep at least a handful of grid steps so pipelining / megacore sharding
    # still has work to distribute on large inputs.
    cap = max(_ROW_ALIGN, (n_rows // _MIN_GRID_STEPS) // _ROW_ALIGN * _ROW_ALIGN)
    tm = min(tm, cap)
    tm = max(_ROW_ALIGN, (tm // _ROW_ALIGN) * _ROW_ALIGN)
    return min(tm, n_rows)


def _pick_cf_tiles(batch, channels, hw, itemsize, target_bytes):
    """(batch_tile, hw_tile) for the channels_first kernel."""
    slab_bytes = channels * hw * itemsize          # one full (C, H*W) image
    if slab_bytes <= target_bytes:
        bt = int(max(1, min(batch, target_bytes // max(slab_bytes, 1))))
        return bt, hw
    hwt = target_bytes // max(channels * itemsize, 1)
    if hwt >= hw:
        return 1, hw
    hwt = max(_LANE_ALIGN, (hwt // _LANE_ALIGN) * _LANE_ALIGN)
    return 1, int(min(hwt, hw))


def _layernorm_rows_kernel(x_ref, w_ref, b_ref, o_ref, *, eps):
    # x_ref: (tm, C) tile; normalize over the lane (C) axis.
    x = x_ref[...].astype(jnp.float32)
    mean = jnp.mean(x, axis=-1, keepdims=True)
    xc = x - mean
    # Two-pass (centered) variance: matches the PyTorch form and avoids the
    # E[x^2] - mean^2 cancellation.  The kernel is HBM-bound, so the extra
    # lane reduction is free filler (XLU is not the binding slot here).
    var = jnp.mean(xc * xc, axis=-1, keepdims=True)
    y = xc * jax.lax.rsqrt(var + eps)
    y = y * w_ref[...].astype(jnp.float32) + b_ref[...].astype(jnp.float32)
    o_ref[...] = y.astype(o_ref.dtype)


def _layernorm_nchw_kernel(x_ref, w_ref, b_ref, o_ref, *, eps):
    # x_ref: (bt, C, hw_tile) tile; normalize over the channel (sublane) axis
    # while H*W sits on the lane axis -> lane-dense loads/stores even for C=4,
    # and no NCHW<->NHWC transposes (each would be a full HBM read+write).
    x = x_ref[...].astype(jnp.float32)
    mean = jnp.mean(x, axis=1, keepdims=True)
    xc = x - mean
    var = jnp.mean(xc * xc, axis=1, keepdims=True)
    y = xc * jax.lax.rsqrt(var + eps)
    y = y * w_ref[...].astype(jnp.float32) + b_ref[...].astype(jnp.float32)
    o_ref[...] = y.astype(o_ref.dtype)


def _layer_norm_rows(x2d, weight, bias, eps):
    """LayerNorm over the last (lane) axis of a (R, C) array."""
    # NOTE: for C < 128 a (tm, C) block only fills C/128 of each vreg and
    # stores are partially masked.  The real ConvNeXt channels_last LNs use
    # C in {96, 192, 384, 768}; the only sub-128 value (96) does not divide
    # 128, so the g = 128 // C lane-packing rewrite does not apply there and
    # the kernel stays HBM-bound with fully contiguous DMAs.  The tiny-C case
    # (C=4) is the channels_first path, which uses the lane-dense NCHW kernel.
    R, C = x2d.shape
    itemsize = jnp.dtype(x2d.dtype).itemsize
    vmem_limit = _vmem_limit_bytes()
    tm = _pick_row_tile(R, C * itemsize, _target_tile_bytes(vmem_limit))

    w2d = weight.reshape(1, C)
    b2d = bias.reshape(1, C)

    return pl.pallas_call(
        functools.partial(_layernorm_rows_kernel, eps=eps),
        out_shape=jax.ShapeDtypeStruct((R, C), x2d.dtype),
        grid_spec=pltpu.PrefetchScalarGridSpec(
            num_scalar_prefetch=0,
            grid=(pl.cdiv(R, tm),),          # ragged last block handled by Pallas
            in_specs=[
                pl.BlockSpec((tm, C), lambda i: (i, 0)),
                pl.BlockSpec((1, C), lambda i: (0, 0)),
                pl.BlockSpec((1, C), lambda i: (0, 0)),
            ],
            out_specs=pl.BlockSpec((tm, C), lambda i: (i, 0)),
        ),
        compiler_params=pltpu.CompilerParams(
            dimension_semantics=("parallel",),
            vmem_limit_bytes=vmem_limit,
        ),
    )(x2d, w2d, b2d)


def _layer_norm_nchw(x, weight, bias, eps):
    """LayerNorm over the channel axis of an NCHW tensor, no transposes."""
    B, C, H, W = x.shape
    HW = H * W
    x3 = x.reshape(B, C, HW)                 # free reshape (row-major)
    itemsize = jnp.dtype(x.dtype).itemsize
    vmem_limit = _vmem_limit_bytes()
    bt, hwt = _pick_cf_tiles(B, C, HW, itemsize, _target_tile_bytes(vmem_limit))

    w3 = weight.reshape(1, C, 1)
    b3 = bias.reshape(1, C, 1)

    out = pl.pallas_call(
        functools.partial(_layernorm_nchw_kernel, eps=eps),
        out_shape=jax.ShapeDtypeStruct((B, C, HW), x.dtype),
        grid_spec=pltpu.PrefetchScalarGridSpec(
            num_scalar_prefetch=0,
            grid=(pl.cdiv(B, bt), pl.cdiv(HW, hwt)),
            in_specs=[
                pl.BlockSpec((bt, C, hwt), lambda i, j: (i, 0, j)),
                pl.BlockSpec((1, C, 1), lambda i, j: (0, 0, 0)),
                pl.BlockSpec((1, C, 1), lambda i, j: (0, 0, 0)),
            ],
            out_specs=pl.BlockSpec((bt, C, hwt), lambda i, j: (i, 0, j)),
        ),
        compiler_params=pltpu.CompilerParams(
            dimension_semantics=("parallel", "parallel"),
            vmem_limit_bytes=vmem_limit,
        ),
    )(x3, w3, b3)
    return out.reshape(B, C, H, W)


class LayerNorm:
    """JAX/Pallas port of the ConvNeXt-V2 LayerNorm module."""

    def __init__(self, normalized_shape, eps=1e-6, data_format="channels_last",
                 key=None):
        if data_format not in ["channels_last", "channels_first"]:
            raise NotImplementedError
        self.eps = eps
        self.data_format = data_format
        self.normalized_shape = (normalized_shape,)
        # Module init is ones/zeros; perturb deterministically so the affine
        # part is actually exercised (still fully in-script, no checkpoint).
        if key is None:
            key = jax.random.PRNGKey(0)
        kw, kb = jax.random.split(key)
        self.weight = jnp.ones((normalized_shape,), jnp.float32) + \
            0.1 * jax.random.normal(kw, (normalized_shape,), jnp.float32)
        self.bias = jnp.zeros((normalized_shape,), jnp.float32) + \
            0.1 * jax.random.normal(kb, (normalized_shape,), jnp.float32)

    def __call__(self, x):
        if self.data_format == "channels_last":
            # x: (..., C); activations keep their dtype (bf16 passes straight
            # through -- halves HBM traffic; compute is still f32 in-kernel).
            shape = x.shape
            C = shape[-1]
            x2d = x.reshape(-1, C)           # free reshape
            y = _layer_norm_rows(x2d, self.weight, self.bias, self.eps)
            return y.reshape(shape)
        else:
            # x: (B, C, H, W); normalized over C without leaving NCHW layout.
            return _layer_norm_nchw(x, self.weight, self.bias, self.eps)


def _reference(x, weight, bias, eps, data_format):
    if data_format == "channels_last":
        mean = jnp.mean(x, axis=-1, keepdims=True)
        var = jnp.mean((x - mean) ** 2, axis=-1, keepdims=True)
        return (x - mean) / jnp.sqrt(var + eps) * weight + bias
    else:
        u = jnp.mean(x, axis=1, keepdims=True)
        s = jnp.mean((x - u) ** 2, axis=1, keepdims=True)
        xn = (x - u) / jnp.sqrt(s + eps)
        return weight[:, None, None] * xn + bias[:, None, None]


if __name__ == "__main__":
    key = jax.random.PRNGKey(0)
    k1, k2, k3, kp1, kp2 = jax.random.split(key, 5)

    # channels_first case (NCHW), like the downsample LNs in ConvNeXt.
    C1 = 4
    x_cf = jax.random.normal(k1, (2, C1, 16, 16), jnp.float32)
    ln_cf = LayerNorm(C1, eps=1e-6, data_format="channels_first", key=kp1)
    y_cf = jax.block_until_ready(ln_cf(x_cf))
    ref_cf = _reference(x_cf, ln_cf.weight, ln_cf.bias, ln_cf.eps, "channels_first")
    assert y_cf.shape == x_cf.shape
    assert jnp.allclose(y_cf, ref_cf, atol=1e-4, rtol=1e-4)

    # channels_last case (NHWC), like the LN inside ConvNeXt blocks.
    C2 = 32
    x_cl = jax.random.normal(k2, (2, 8, 8, C2), jnp.float32)
    ln_cl = LayerNorm(C2, eps=1e-6, data_format="channels_last", key=kp2)
    y_cl = jax.block_until_ready(ln_cl(x_cl))
    ref_cl = _reference(x_cl, ln_cl.weight, ln_cl.bias, ln_cl.eps, "channels_last")
    assert y_cl.shape == x_cl.shape
    assert jnp.allclose(y_cl, ref_cl, atol=1e-4, rtol=1e-4)

    # bf16 activations flow straight through the same kernel (no wrapper-side
    # f32 up-cast), halving HBM traffic for the bandwidth-bound op.
    x_bf = jax.random.normal(k3, (2, 8, 8, C2), jnp.float32).astype(jnp.bfloat16)
    y_bf = jax.block_until_ready(ln_cl(x_bf))
    ref_bf = _reference(x_bf.astype(jnp.float32), ln_cl.weight, ln_cl.bias,
                        ln_cl.eps, "channels_last")
    assert y_bf.dtype == jnp.bfloat16
    assert jnp.allclose(y_bf.astype(jnp.float32), ref_bf, atol=2e-2, rtol=2e-2)

    print("KERNEL_OK")
</pallas_src>

<mosaic_0001>
module attributes {stable_mosaic.version = 11 : i64} {
  func.func @_layernorm_nchw_kernel(%arg0: i32, %arg1: i32, %arg2: memref<2x4x256xf32, #tpu.memory_space<vmem>>, %arg3: memref<1x4x1xf32, #tpu.memory_space<vmem>>, %arg4: memref<1x4x1xf32, #tpu.memory_space<vmem>>, %arg5: memref<2x4x256xf32, #tpu.memory_space<vmem>>) attributes {dimension_semantics = [#tpu.dimension_semantics<parallel>, #tpu.dimension_semantics<parallel>], iteration_bounds = array<i64: 1, 1>, scalar_prefetch = 0 : i64, scratch_operands = 0 : i64, tpu.core_type = #tpu.core_type<tc>, window_params = [{transform_indices = @transform_0, window_bounds = array<i64: 2, 4, 256>}, {pipeline_mode = #tpu.pipeline_mode<synchronous>, transform_indices = @transform_1, window_bounds = array<i64: 1, 4, 1>}, {pipeline_mode = #tpu.pipeline_mode<synchronous>, transform_indices = @transform_2, window_bounds = array<i64: 1, 4, 1>}, {transform_indices = @transform_3, window_bounds = array<i64: 2, 4, 256>}]} {
    %c0 = arith.constant 0 : index
    %c0_0 = arith.constant 0 : index
    %c0_1 = arith.constant 0 : index
    %0 = vector.load %arg2[%c0, %c0_0, %c0_1] : memref<2x4x256xf32, #tpu.memory_space<vmem>>, vector<2x4x256xf32>
    %cst = arith.constant dense<0.000000e+00> : vector<2x256xf32>
    %1 = vector.multi_reduction <add>, %0, %cst [1] : vector<2x4x256xf32> to vector<2x256xf32>
    %2 = vector.shape_cast %1 : vector<2x256xf32> to vector<2x1x256xf32>
    %cst_2 = arith.constant 4.000000e+00 : f32
    %3 = vector.broadcast %cst_2 : f32 to vector<2x1x256xf32>
    %4 = arith.divf %2, %3 : vector<2x1x256xf32>
    %5 = vector.broadcast %4 : vector<2x1x256xf32> to vector<2x4x256xf32>
    %6 = arith.subf %0, %5 : vector<2x4x256xf32>
    %7 = arith.mulf %6, %6 : vector<2x4x256xf32>
    %cst_3 = arith.constant dense<0.000000e+00> : vector<2x256xf32>
    %8 = vector.multi_reduction <add>, %7, %cst_3 [1] : vector<2x4x256xf32> to vector<2x256xf32>
    %9 = vector.shape_cast %8 : vector<2x256xf32> to vector<2x1x256xf32>
    %cst_4 = arith.constant 4.000000e+00 : f32
    %10 = vector.broadcast %cst_4 : f32 to vector<2x1x256xf32>
    %11 = arith.divf %9, %10 : vector<2x1x256xf32>
    %cst_5 = arith.constant 9.99999997E-7 : f32
    %12 = vector.broadcast %cst_5 : f32 to vector<2x1x256xf32>
    %13 = arith.addf %11, %12 : vector<2x1x256xf32>
    %14 = math.rsqrt %13 : vector<2x1x256xf32>
    %15 = vector.broadcast %14 : vector<2x1x256xf32> to vector<2x4x256xf32>
    %16 = arith.mulf %6, %15 : vector<2x4x256xf32>
    %c0_6 = arith.constant 0 : index
    %c0_7 = arith.constant 0 : index
    %c0_8 = arith.constant 0 : index
    %17 = vector.load %arg3[%c0_6, %c0_7, %c0_8] : memref<1x4x1xf32, #tpu.memory_space<vmem>>, vector<1x4x1xf32>
    %18 = vector.broadcast %17 : vector<1x4x1xf32> to vector<2x4x256xf32>
    %19 = arith.mulf %16, %18 : vector<2x4x256xf32>
    %c0_9 = arith.constant 0 : index
    %c0_10 = arith.constant 0 : index
    %c0_11 = arith.constant 0 : index
    %20 = vector.load %arg4[%c0_9, %c0_10, %c0_11] : memref<1x4x1xf32, #tpu.memory_space<vmem>>, vector<1x4x1xf32>
    %21 = vector.broadcast %20 : vector<1x4x1xf32> to vector<2x4x256xf32>
    %22 = arith.addf %19, %21 : vector<2x4x256xf32>
    %c0_12 = arith.constant 0 : index
    %c0_13 = arith.constant 0 : index
    %c0_14 = arith.constant 0 : index
    %23 = vector.load %arg5[%c0_12, %c0_13, %c0_14] : memref<2x4x256xf32, #tpu.memory_space<vmem>>, vector<2x4x256xf32>
    tpu.vector_store %arg5[%c0_12, %c0_13, %c0_14], %22 {strides = array<i32>} : memref<2x4x256xf32, #tpu.memory_space<vmem>>, vector<2x4x256xf32>,
    return
  }
  func.func @transform_0(%arg0: i32, %arg1: i32) -> (i32, i32, i32) {
    %c0_i32 = arith.constant 0 : i32
    %c0_i32_0 = arith.constant 0 : i32
    return %arg0, %c0_i32, %arg1 : i32, i32, i32
  }
  func.func @transform_1(%arg0: i32, %arg1: i32) -> (i32, i32, i32) {
    %c0_i32 = arith.constant 0 : i32
    %c0_i32_0 = arith.constant 0 : i32
    %c0_i32_1 = arith.constant 0 : i32
    %c0_i32_2 = arith.constant 0 : i32
    return %c0_i32, %c0_i32_0, %c0_i32_1 : i32, i32, i32
  }
  func.func @transform_2(%arg0: i32, %arg1: i32) -> (i32, i32, i32) {
    %c0_i32 = arith.constant 0 : i32
    %c0_i32_0 = arith.constant 0 : i32
    %c0_i32_1 = arith.constant 0 : i32
    %c0_i32_2 = arith.constant 0 : i32
    return %c0_i32, %c0_i32_0, %c0_i32_1 : i32, i32, i32
  }
  func.func @transform_3(%arg0: i32, %arg1: i32) -> (i32, i32, i32) {
    %c0_i32 = arith.constant 0 : i32
    %c0_i32_0 = arith.constant 0 : i32
    return %arg0, %c0_i32, %arg1 : i32, i32, i32
  }
}

</mosaic_0001>

<llo_original>
// kernel: tpu_custom_call.1
$region0: #{tpu_custom_call.1}
  #allocation0 [shape = 'u32[]', space=smem, size = 0x4, offset = 0x4, fixed_abs, tag = 'smem constant byte address 0x4 - core index']
  #allocation1 [shape = 'u32[144,128]{1,0:T(1,128)}', space=vmem, size = 0x12000, scoped, tag = 'internal scratch']
  %s0 = inlined_call_operand.hbm [shape: f32[2,4,256], index: 0, kind: input, shape index: {}]
  %s1 = inlined_call_operand.vmem [shape: f32[1,4,1], index: 1, kind: input, shape index: {}]
  %s2 = inlined_call_operand.vmem [shape: f32[1,4,1], index: 2, kind: input, shape index: {}]
  %s3 = inlined_call_operand.hbm [shape: f32[2,4,256], index: 3, kind: output, shape index: {}]
  %s4 = sld [smem:[#allocation0]]
  $region26: #{tpu_custom_call.1} parent=0
    _
  %s6 = ssub.s32 1, %s4
  %s7 = scalar_select 0, %s6, %s4
  $region1: #{tpu_custom_call.1} parent=0
    #allocation2 [shape = 'u8[8192]{0}', space=vmem, size = 0x2000, scoped, tag = 'input window, operand 0, single buffered']
    #allocation3 [shape = 's32[1]{0}', space=sflag, size = 0x4, scoped, tag = 'scoped memory for tpu_custom_call.1']
    #allocation4 [shape = 's32[1]{0}', space=sflag, size = 0x4, scoped, tag = 'scoped memory for tpu_custom_call.1']
    #allocation5 [shape = 'u8[8192]{0}', space=vmem, size = 0x2000, scoped, tag = 'output window, operand 0, single buffered']
    %8 = vsyncpa [#allocation3], 0
    %9 = vsyncpa [#allocation4], 0
    // Predicated region
    $region2: #{tpu_custom_call.1} parent=1 // pred_check
      _
    $region3: #{tpu_custom_call.1} parent=1 // pred_check_branch
      %11 = sbr.rel (0) target = $region5
    $region4: #{tpu_custom_call.1} parent=1 // pred_region
      %s13 = ssub.s32 256, 256
      %14 = vsyncadd [#allocation3], %s13
      %s15 = sshll.u32 [#allocation2], 4
      %s16 = int_to_ptr.vmem [resolvable:$true] %s15
      %21 = dma.hbm_to_vmem [thread:$0]  %s0, 256, %s16, [#allocation3], 128, 128, 8
    $region5: #{tpu_custom_call.1} parent=1 // pred_fallthru
      _
    // Predicated region
    $region6: #{tpu_custom_call.1} parent=1 // pred_check
      _
    $region7: #{tpu_custom_call.1} parent=1 // pred_check_branch
      %23 = sbr.rel (0) target = $region9
    $region8: #{tpu_custom_call.1} parent=1 // pred_region
      _
    $region9: #{tpu_custom_call.1} parent=1 // pred_fallthru
      _
    // Predicated region
    $region10: #{tpu_custom_call.1} parent=1 // pred_check
      _
    $region11: #{tpu_custom_call.1} parent=1 // pred_check_branch
      %25 = sbr.rel (0) target = $region13
    $region12: #{tpu_custom_call.1} parent=1 // pred_region
      _
    $region13: #{tpu_custom_call.1} parent=1 // pred_fallthru
      _
    // Predicated region
    $region14: #{tpu_custom_call.1} parent=1 // pred_check
      _
    $region15: #{tpu_custom_call.1} parent=1 // pred_check_branch
      %27 = sbr.rel (0) target = $region17
    $region16: #{tpu_custom_call.1} parent=1 // pred_region
      %28 = dma.done [#allocation3], 256
    $region17: #{tpu_custom_call.1} parent=1 // pred_fallthru
      _
    %v29 = vld [vmem:[#allocation2] sm:$0xff]
    %v30 = vld [vmem:[#allocation2 + $0x8] sm:$0xff]
    %v33 = vcombine.high %v29, %v29
    %v34 = vcombine.high %v30, %v30
    %vm37 = vcmask 1043456
    %v38 = vsel %vm37, %v29, 0.0
    %v39 = vrot.slane %v38, 4
    %v40 = vadd.f32 %v38, %v39
    %v41 = vrot.slane %v40, 2
    %v42 = vadd.f32 %v40, %v41
    %v43 = vrot.slane %v42, 1
    %v44 = vadd.f32 %v42, %v43
    %v45 = vsel %vm37, %v33, 0.0
    %v46 = vrot.slane %v45, 4
    %v47 = vadd.f32 %v45, %v46
    %v48 = vrot.slane %v47, 2
    %v49 = vadd.f32 %v47, %v48
    %v50 = vrot.slane %v49, 1
    %v51 = vadd.f32 %v49, %v50
    %v52 = vsel %vm37, %v30, 0.0
    %v53 = vrot.slane %v52, 4
    %v54 = vadd.f32 %v52, %v53
    %v55 = vrot.slane %v54, 2
    %v56 = vadd.f32 %v54, %v55
    %v57 = vrot.slane %v56, 1
    %v58 = vadd.f32 %v56, %v57
    %v59 = vsel %vm37, %v34, 0.0
    %v60 = vrot.slane %v59, 4
    %v61 = vadd.f32 %v59, %v60
    %v62 = vrot.slane %v61, 2
    %v63 = vadd.f32 %v61, %v62
    %v64 = vrot.slane %v63, 1
    %v65 = vadd.f32 %v63, %v64
    %v66 = vrcp.pop 4.0
    %v67 = vmul.f32 %v44, %v66
    %v68 = vmul.f32 %v51, %v66
    %v69 = vmul.f32 %v58, %v66
    %v70 = vmul.f32 %v65, %v66
    %v75 = vcombine.low %v67, %v68
    %v76 = vcombine.low %v69, %v70
    %v79 = vsub.f32 %v29, %v75
    %v80 = vsub.f32 %v30, %v76
    %v81 = vmul.f32 %v79, %v79
    %v82 = vmul.f32 %v80, %v80
    %v85 = vcombine.high %v81, %v81
    %v86 = vcombine.high %v82, %v82
    %v89 = vsel %vm37, %v81, 0.0
    %v90 = vrot.slane %v89, 4
    %v91 = vadd.f32 %v89, %v90
    %v92 = vrot.slane %v91, 2
    %v93 = vadd.f32 %v91, %v92
    %v94 = vrot.slane %v93, 1
    %v95 = vadd.f32 %v93, %v94
    %v96 = vsel %vm37, %v85, 0.0
    %v97 = vrot.slane %v96, 4
    %v98 = vadd.f32 %v96, %v97
    %v99 = vrot.slane %v98, 2
    %v100 = vadd.f32 %v98, %v99
    %v101 = vrot.slane %v100, 1
    %v102 = vadd.f32 %v100, %v101
    %v103 = vsel %vm37, %v82, 0.0
    %v104 = vrot.slane %v103, 4
    %v105 = vadd.f32 %v103, %v104
    %v106 = vrot.slane %v105, 2
    %v107 = vadd.f32 %v105, %v106
    %v108 = vrot.slane %v107, 1
    %v109 = vadd.f32 %v107, %v108
    %v110 = vsel %vm37, %v86, 0.0
    %v111 = vrot.slane %v110, 4
    %v112 = vadd.f32 %v110, %v111
    %v113 = vrot.slane %v112, 2
    %v114 = vadd.f32 %v112, %v113
    %v115 = vrot.slane %v114, 1
    %v116 = vadd.f32 %v114, %v115
    %v117 = vmul.f32 %v95, %v66
    %v118 = vmul.f32 %v102, %v66
    %v119 = vmul.f32 %v109, %v66
    %v120 = vmul.f32 %v116, %v66
    %v121 = vadd.f32 %v117, 1e-06
    %v122 = vadd.f32 %v118, 1e-06
    %v123 = vadd.f32 %v119, 1e-06
    %v124 = vadd.f32 %v120, 1e-06
    %v125 = vrsqrt.pop %v121
    %v126 = vrsqrt.pop %v122
    %v127 = vrsqrt.pop %v123
    %v128 = vrsqrt.pop %v124
    %v133 = vcombine.low %v125, %v126
    %v134 = vcombine.low %v127, %v128
    %v137 = vmul.f32 %v79, %v133
    %v138 = vmul.f32 %v80, %v134
    %v139 = vld [vmem:[%s1] sm:$0xf]
    %141 = vset.pattern.permute.xlu0 0
    %142 = vperm.xlu0 %141, %v139
    %v143 = vpop.permute.xlu0 %142
    %v145 = vunpack.c.l.s4 839922192
    %v146 = vunpack.c.0.s8 %v145
    %v147 = vlaneseq
    %v148 = vshrl.u32 %v147, 7
    %v149 = vsub.s32 %v146, %v148
    %v150 = vrot.slane %v143, %v149
    %v152 = vmul.f32 %v137, %v150
    %v153 = vmul.f32 %v138, %v150
    %v154 = vld [vmem:[%s2] sm:$0xf]
    %156 = vset.pattern.permute.xlu0 0
    %157 = vperm.xlu0 %156, %v154
    %v158 = vpop.permute.xlu0 %157
    %v160 = vunpack.c.l.s4 839922192
    %v161 = vunpack.c.0.s8 %v160
    %v162 = vlaneseq
    %v163 = vshrl.u32 %v162, 7
    %v164 = vsub.s32 %v161, %v163
    %v165 = vrot.slane %v158, %v164
    %v167 = vadd.f32 %v152, %v165
    %v168 = vadd.f32 %v153, %v165
    %169 = vst [vmem:[#allocation5] sm:$0xff] %v167
    %170 = vst [vmem:[#allocation5 + $0x8] sm:$0xff] %v168
    // Predicated region
    $region18: #{tpu_custom_call.1} parent=1 // pred_check
      _
    $region19: #{tpu_custom_call.1} parent=1 // pred_check_branch
      %172 = sbr.rel (0) target = $region21
    $region20: #{tpu_custom_call.1} parent=1 // pred_region
      %s174 = ssub.s32 256, 256
      %175 = vsyncadd [#allocation4], %s174
      %s176 = sshll.u32 [#allocation5], 4
      %s177 = int_to_ptr.vmem [resolvable:$true] %s176
      %182 = dma.vmem_to_hbm [thread:$0]  %s177, 256, %s3, [#allocation4], 128, 128, 8
    $region21: #{tpu_custom_call.1} parent=1 // pred_fallthru
      _
    // Predicated region
    $region22: #{tpu_custom_call.1} parent=1 // pred_check
      _
    $region23: #{tpu_custom_call.1} parent=1 // pred_check_branch
      %184 = sbr.rel (0) target = $region25
    $region24: #{tpu_custom_call.1} parent=1 // pred_region
      %185 = dma.done [#allocation4], 256
    $region25: #{tpu_custom_call.1} parent=1 // pred_fallthru
      _
    %186 = vsyncpa [#allocation3], 1
    %187 = vsyncpa [#allocation4], 1

</llo_original>
